<compile_context>
chip_gen: v6e
topology: v6e:2x2x1
jax: 0.10.0
libtpu: 0.0.40
codegen_flags: <defaults>
</compile_context>

<pallas_src>
import math

import jax
import jax.numpy as jnp
from jax.experimental import pallas as pl
from jax.experimental.pallas import tpu as pltpu


def _fused_split_kernel(x_ref, re_ref, im_ref):
    # x_ref is (tm, 2*d); d is a multiple of 128 so the split is lane-aligned.
    d = re_ref.shape[-1]
    re_ref[...] = x_ref[:, :d]
    im_ref[...] = x_ref[:, d:]


def _split_copy_kernel(xr_ref, xi_ref, re_ref, im_ref):
    # Lane-split path: the split lives entirely in the BlockSpec index maps.
    re_ref[...] = xr_ref[...]
    im_ref[...] = xi_ref[...]


def _round_up(n, m):
    return ((n + m - 1) // m) * m


def _sublane_multiple(dtype):
    # f32 -> 8, bf16 -> 16, int8/fp8 -> 32 (clean sublane packing per dtype).
    return max(8, 32 // jnp.dtype(dtype).itemsize)


def _pick_lane_tile(d, max_lane_elems):
    # Largest multiple of 128 that divides d and is <= max_lane_elems.
    n = d // 128
    cap = max(1, max_lane_elems // 128)
    for c in range(min(n, cap), 0, -1):
        if n % c == 0:
            return 128 * c
    return 128


def _vmem_budget():
    """(block_bytes, vmem_limit_bytes) per TPU generation."""
    block_bytes = 2 * 1024 * 1024
    vmem_limit = 32 * 1024 * 1024
    try:
        info = pltpu.get_tpu_info()
        cap = getattr(info, "vmem_capacity_bytes", None)
        if cap is not None and cap > 64 * 1024 * 1024:
            # v5e / v6e: 128 MiB physical VMEM -> bigger blocks, fewer steps.
            block_bytes = 4 * 1024 * 1024
            vmem_limit = 64 * 1024 * 1024
    except Exception:
        pass  # conservative defaults work on every generation
    return block_bytes, vmem_limit


def concatenated_real_to_cplx(x, *, dim=-1):
    """Returns (real, imag), each of shape x.shape[:-1] + (x.shape[-1]//2,)."""
    nd = x.ndim
    if dim < 0:
        dim += nd
    if dim != nd - 1:
        raise NotImplementedError("only dim=-1 is supported")

    *lead, two_d = x.shape
    assert two_d % 2 == 0, "last dim must be even (real ++ imag)"
    d = two_d // 2
    lead = tuple(lead)
    out_shape = lead + (d,)
    M = math.prod(lead) if lead else 1

    itemsize = jnp.dtype(x.dtype).itemsize
    sub = _sublane_multiple(x.dtype)

    # --- XLA fallback: the halves aren't lane-dense, or M is too small for a
    # clean sublane block.  XLA does these slices at full HBM bandwidth.
    if d == 0 or M == 0 or d < 128 or d % 128 != 0 or M < sub:
        return x[..., :d], x[..., d:]

    block_bytes, vmem_limit = _vmem_budget()
    x2d = x.reshape(M, two_d)

    # Cap the row tile so the row grid has >= 2 blocks (lets v7x's two
    # TensorCores each take grid blocks; no effect on single-TC chips).
    row_cap = _round_up(pl.cdiv(M, 2), sub)

    fused = (2 * d * itemsize * sub) <= block_bytes

    if fused:
        # Single contiguous (tm, 2*d) input read per step; split in-kernel.
        tm = max(sub, (block_bytes // (2 * d * itemsize)) // sub * sub)
        tm = min(tm, row_cap)
        row_blocks = pl.cdiv(M, tm)
        if row_blocks <= 1:
            # Single grid step: pallas_call fixed overhead with no pipelining
            # cannot beat XLA's fused slice copy.
            return x[..., :d], x[..., d:]

        grid = (row_blocks,)
        compiler_params = pltpu.CompilerParams(
            dimension_semantics=("parallel",),
            vmem_limit_bytes=vmem_limit,
        )
        cost = pl.CostEstimate(
            flops=0,
            transcendentals=0,
            bytes_accessed=4 * M * d * itemsize,  # read 2*M*d, write 2*M*d
        )
        real, imag = pl.pallas_call(
            _fused_split_kernel,
            out_shape=(
                jax.ShapeDtypeStruct((M, d), x.dtype),
                jax.ShapeDtypeStruct((M, d), x.dtype),
            ),
            grid=grid,
            in_specs=[pl.BlockSpec((tm, two_d), lambda i: (i, 0))],
            out_specs=(
                pl.BlockSpec((tm, d), lambda i: (i, 0)),
                pl.BlockSpec((tm, d), lambda i: (i, 0)),
            ),
            compiler_params=compiler_params,
            cost_estimate=cost,
        )(x2d)
        return real.reshape(out_shape), imag.reshape(out_shape)

    # --- Lane-split path (huge d only): two offset input BlockSpecs reading
    # the real / imag halves of the same array; kernel is two VMEM copies.
    max_lane_elems = max(128, block_bytes // (itemsize * sub))
    td = _pick_lane_tile(d, max_lane_elems)
    d_blocks = d // td  # imag half starts at block index d_blocks

    tm = max(sub, (block_bytes // (td * itemsize)) // sub * sub)
    tm = min(tm, row_cap)
    row_blocks = pl.cdiv(M, tm)
    if row_blocks * d_blocks <= 1:
        return x[..., :d], x[..., d:]

    grid = (row_blocks, d_blocks)
    compiler_params = pltpu.CompilerParams(
        dimension_semantics=("parallel", "parallel"),
        vmem_limit_bytes=vmem_limit,
    )
    cost = pl.CostEstimate(
        flops=0,
        transcendentals=0,
        bytes_accessed=4 * M * d * itemsize,
    )
    real, imag = pl.pallas_call(
        _split_copy_kernel,
        out_shape=(
            jax.ShapeDtypeStruct((M, d), x.dtype),
            jax.ShapeDtypeStruct((M, d), x.dtype),
        ),
        grid=grid,
        in_specs=[
            pl.BlockSpec((tm, td), lambda i, j: (i, j)),                 # real
            pl.BlockSpec((tm, td), lambda i, j: (i, d_blocks + j)),      # imag
        ],
        out_specs=(
            pl.BlockSpec((tm, td), lambda i, j: (i, j)),
            pl.BlockSpec((tm, td), lambda i, j: (i, j)),
        ),
        compiler_params=compiler_params,
        cost_estimate=cost,
    )(x2d, x2d)
    return real.reshape(out_shape), imag.reshape(out_shape)


def _check(x):
    real, imag = concatenated_real_to_cplx(x)
    jax.block_until_ready((real, imag))
    d = x.shape[-1] // 2
    ref_real, ref_imag = x[..., :d], x[..., d:]
    assert real.shape == ref_real.shape and imag.shape == ref_imag.shape
    assert jnp.allclose(real, ref_real), "real mismatch"
    assert jnp.allclose(imag, ref_imag), "imag mismatch"


if __name__ == "__main__":
    key = jax.random.PRNGKey(0)
    k0, k1, k2, k3, k4 = jax.random.split(key, 5)

    # 1) Module-typical small shape (d = 8 < 128): XLA slice fallback path.
    _check(jax.random.normal(k0, (2, 4, 16, 16), dtype=jnp.float32))

    # 2) Lane-aligned case exercising the fused Pallas kernel (M=128, d=128).
    _check(jax.random.normal(k1, (2, 64, 256), dtype=jnp.float32))

    # 3) Larger d, fused path with a wide contiguous block (d = 2048).
    _check(jax.random.normal(k2, (2, 8, 4096), dtype=jnp.float32))

    # 4) bf16 (sublane multiple 16) through the fused path (d = 256).
    _check(jax.random.normal(k3, (4, 8, 512), dtype=jnp.bfloat16))

    # 5) Ragged row count (M = 1000, not a multiple of the row tile):
    #    locks in Pallas edge-block clipping/masking behaviour.
    _check(jax.random.normal(k4, (5, 200, 256), dtype=jnp.float32))

    print("KERNEL_OK")
</pallas_src>

<mosaic_0001>
module attributes {stable_mosaic.version = 11 : i64} {
  func.func @_fused_split_kernel(%arg0: i32, %arg1: memref<64x256xf32, #tpu.memory_space<vmem>>, %arg2: memref<64x128xf32, #tpu.memory_space<vmem>>, %arg3: memref<64x128xf32, #tpu.memory_space<vmem>>) attributes {dimension_semantics = [#tpu.dimension_semantics<parallel>], iteration_bounds = array<i64: 2>, scalar_prefetch = 0 : i64, scratch_operands = 0 : i64, tpu.core_type = #tpu.core_type<tc>, window_params = [{transform_indices = @transform_0, window_bounds = array<i64: 64, 256>}, {transform_indices = @transform_1, window_bounds = array<i64: 64, 128>}, {transform_indices = @transform_2, window_bounds = array<i64: 64, 128>}]} {
    %c0 = arith.constant 0 : index
    %c0_0 = arith.constant 0 : index
    %0 = vector.load %arg1[%c0, %c0_0] : memref<64x256xf32, #tpu.memory_space<vmem>>, vector<64x128xf32>
    %c0_1 = arith.constant 0 : index
    %c0_2 = arith.constant 0 : index
    %1 = vector.load %arg2[%c0_1, %c0_2] : memref<64x128xf32, #tpu.memory_space<vmem>>, vector<64x128xf32>
    tpu.vector_store %arg2[%c0_1, %c0_2], %0 {strides = array<i32>} : memref<64x128xf32, #tpu.memory_space<vmem>>, vector<64x128xf32>,
    %c0_3 = arith.constant 0 : index
    %c128 = arith.constant 128 : index
    %2 = vector.load %arg1[%c0_3, %c128] : memref<64x256xf32, #tpu.memory_space<vmem>>, vector<64x128xf32>
    %c0_4 = arith.constant 0 : index
    %c0_5 = arith.constant 0 : index
    %3 = vector.load %arg3[%c0_4, %c0_5] : memref<64x128xf32, #tpu.memory_space<vmem>>, vector<64x128xf32>
    tpu.vector_store %arg3[%c0_4, %c0_5], %2 {strides = array<i32>} : memref<64x128xf32, #tpu.memory_space<vmem>>, vector<64x128xf32>,
    return
  }
  func.func @transform_0(%arg0: i32) -> (i32, i32) {
    %c0_i32 = arith.constant 0 : i32
    %c0_i32_0 = arith.constant 0 : i32
    return %arg0, %c0_i32 : i32, i32
  }
  func.func @transform_1(%arg0: i32) -> (i32, i32) {
    %c0_i32 = arith.constant 0 : i32
    %c0_i32_0 = arith.constant 0 : i32
    return %arg0, %c0_i32 : i32, i32
  }
  func.func @transform_2(%arg0: i32) -> (i32, i32) {
    %c0_i32 = arith.constant 0 : i32
    %c0_i32_0 = arith.constant 0 : i32
    return %arg0, %c0_i32 : i32, i32
  }
}

</mosaic_0001>

<llo_original>
// kernel: tpu_custom_call.1
$region0: #{tpu_custom_call.1}
  #allocation0 [shape = 'u32[]', space=smem, size = 0x4, offset = 0x4, fixed_abs, tag = 'smem constant byte address 0x4 - core index']
  #allocation1 [shape = 'u32[144,128]{1,0:T(1,128)}', space=vmem, size = 0x12000, scoped, tag = 'internal scratch']
  %s0 = inlined_call_operand.hbm [shape: f32[128,256], index: 0, kind: input, shape index: {}]
  %s1 = inlined_call_operand.hbm [shape: f32[128,128], index: 1, kind: output, shape index: {0}]
  %s2 = inlined_call_operand.hbm [shape: f32[128,128], index: 2, kind: output, shape index: {1}]
  %3 = xla_tuple %s1, %s2
  %s4 = sld [smem:[#allocation0]]
  $region49: #{tpu_custom_call.1} parent=0
    _
  %s6 = ssub.s32 1, %s4
  %s7 = scalar_select 0, %s6, %s4
  $region1: #{tpu_custom_call.1} parent=0
    #allocation2 [shape = 'u8[131072]{0}', space=vmem, size = 0x20000, scoped, tag = 'input window, operand 0']
    #allocation3 [shape = 's32[2]{0}', space=sflag, size = 0x8, scoped, tag = 'scoped memory for tpu_custom_call.1']
    #allocation4 [shape = 's32[2]{0}', space=sflag, size = 0x8, scoped, tag = 'scoped memory for tpu_custom_call.1']
    #allocation5 [shape = 'u8[65536]{0}', space=vmem, size = 0x10000, scoped, tag = 'output window, operand 0']
    #allocation6 [shape = 'u8[65536]{0}', space=vmem, size = 0x10000, scoped, tag = 'output window, operand 1']
    #allocation7 [shape = 's32[2]{0}', space=sflag, size = 0x8, scoped, tag = 'scoped memory for tpu_custom_call.1']
    %8 = vsyncpa [#allocation3], 0
    %s9 = scalar_lea.sflag [#allocation3], 1
    %10 = vsyncpa %s9, 0
    %11 = vsyncpa [#allocation4], 0
    %s12 = scalar_lea.sflag [#allocation4], 1
    %13 = vsyncpa %s12, 0
    %14 = vsyncpa [#allocation7], 0
    %s15 = scalar_lea.sflag [#allocation7], 1
    %16 = vsyncpa %s15, 0
    loop: start=0, step=1, limit=4
    $region2: #{tpu_custom_call.1} parent=1 // loop_pre_header
      _
    $region3: #{tpu_custom_call.1} parent=1 // loop_header
      %s18 = sphi 0, %s22
      %p19 = scmp.ge.s32.totalorder %s18, 4
      %s28 = sphi 0, %s30
      %s31 = sphi 0, %s28
      %s32 = sphi 0, %s31
      %s48 = sphi 0, %s32
      %s54 = sphi 0, %s56
      %s57 = sphi 0, %s54
      %s58 = sphi 0, %s57
      %s74 = sphi 0, %s58
      %s80 = sphi 0, %s82
      %s83 = sphi 0, %s80
      %s84 = sphi 0, %s83
      %s100 = sphi 0, %s84
    $region4: #{tpu_custom_call.1} parent=1 // loop_header_branch
      %21 = sbr.rel (%p19) target = $region8
    $region5: #{tpu_custom_call.1} parent=1 // loop_body
      %s23 = ssub.s32 %s18, 1
      %s24 = ssub.s32 %s18, 2
      %s25 = sadd.s32 %s18, 1
      %s26 = ssub.s32 %s18, %s25
      %p27 = scmp.eq.s32.totalorder %s26, 0
      %s29 = sadd.s32 %s28, 1
      %s30 = scalar_select %p27, %s28, %s29
      %p33 = pneg %p27
      %p34 = scmp.eq.s32.totalorder %s18, 1
      %p35 = por %p33, %p34
      %p36 = scmp.ne.s32.totalorder %s28, %s31
      %p37 = scmp.eq.s32.totalorder %s18, 0
      %p38 = por %p36, %p37
      %p39 = scmp.ne.s32.totalorder %s28, %s31
      %p40 = scmp.eq.s32.totalorder %s23, 1
      %p41 = por %p39, %p40
      %p42 = scmp.ne.s32.totalorder %s31, %s32
      %p43 = scmp.eq.s32.totalorder %s23, 0
      %p44 = por %p42, %p43
      %p45 = scmp.ne.s32.totalorder %s31, %s32
      %p46 = scmp.eq.s32.totalorder %s24, 1
      %p47 = por %p45, %p46
      %p49 = scmp.ne.s32.totalorder %s32, %s48
      %p50 = scmp.eq.s32.totalorder %s24, 0
      %p51 = por %p49, %p50
      %s52 = ssub.s32 %s18, %s25
      %p53 = scmp.eq.s32.totalorder %s52, 0
      %s55 = sadd.s32 %s54, 1
      %s56 = scalar_select %p53, %s54, %s55
      %p59 = pneg %p53
      %p60 = scmp.eq.s32.totalorder %s18, 1
      %p61 = por %p59, %p60
      %p62 = scmp.ne.s32.totalorder %s54, %s57
      %p63 = scmp.eq.s32.totalorder %s18, 0
      %p64 = por %p62, %p63
      %p65 = scmp.ne.s32.totalorder %s54, %s57
      %p66 = scmp.eq.s32.totalorder %s23, 1
      %p67 = por %p65, %p66
      %p68 = scmp.ne.s32.totalorder %s57, %s58
      %p69 = scmp.eq.s32.totalorder %s23, 0
      %p70 = por %p68, %p69
      %p71 = scmp.ne.s32.totalorder %s57, %s58
      %p72 = scmp.eq.s32.totalorder %s24, 1
      %p73 = por %p71, %p72
      %p75 = scmp.ne.s32.totalorder %s58, %s74
      %p76 = scmp.eq.s32.totalorder %s24, 0
      %p77 = por %p75, %p76
      %s78 = ssub.s32 %s18, %s25
      %p79 = scmp.eq.s32.totalorder %s78, 0
      %s81 = sadd.s32 %s80, 1
      %s82 = scalar_select %p79, %s80, %s81
      %p85 = pneg %p79
      %p86 = scmp.eq.s32.totalorder %s18, 1
      %p87 = por %p85, %p86
      %p88 = scmp.ne.s32.totalorder %s80, %s83
      %p89 = scmp.eq.s32.totalorder %s18, 0
      %p90 = por %p88, %p89
      %p91 = scmp.ne.s32.totalorder %s80, %s83
      %p92 = scmp.eq.s32.totalorder %s23, 1
      %p93 = por %p91, %p92
      %p94 = scmp.ne.s32.totalorder %s83, %s84
      %p95 = scmp.eq.s32.totalorder %s23, 0
      %p96 = por %p94, %p95
      %p97 = scmp.ne.s32.totalorder %s83, %s84
      %p98 = scmp.eq.s32.totalorder %s24, 1
      %p99 = por %p97, %p98
      %p101 = scmp.ne.s32.totalorder %s84, %s100
      %p102 = scmp.eq.s32.totalorder %s24, 0
      %p103 = por %p101, %p102
      %p104 = scmp.le.s32.totalorder 1, %s18
      %p105 = scmp.lt.s32.totalorder %s18, 3
      %p106 = pnand %p104, %p105
      %p107 = pneg %p106
      // Predicated region
      $region9: #{tpu_custom_call.1} parent=5 // pred_check
        _
      $region10: #{tpu_custom_call.1} parent=5 // pred_check_branch
        %109 = sbr.rel (%p106) target = $region12
      $region11: #{tpu_custom_call.1} parent=5 // pred_region
        %s110 = ssub.s32 %s18, 1
      $region12: #{tpu_custom_call.1} parent=5 // pred_fallthru
        _
      %p111 = scmp.lt.s32.totalorder %s18, 2
      // Predicated region
      $region13: #{tpu_custom_call.1} parent=5 // pred_check
        %p112 = pneg %p111
      $region14: #{tpu_custom_call.1} parent=5 // pred_check_branch
        %114 = sbr.rel (%p112) target = $region16
      $region15: #{tpu_custom_call.1} parent=5 // pred_region
        // Predicated region
        $region17: #{tpu_custom_call.1} parent=15 // pred_check
          %p115 = pneg %p38
        $region18: #{tpu_custom_call.1} parent=15 // pred_check_branch
          %117 = sbr.rel (%p115) target = $region20
        $region19: #{tpu_custom_call.1} parent=15 // pred_region
          %s118 = sand.u32 %s28, 1
          %s119 = scalar_lea.sflag [#allocation3], %s118
          %s120 = sand.u32 %s28, 1
          %s121 = smul.addr %s120, 128
          %s122 = scalar_lea.vmem [#allocation2], %s121
          %s123 = smul.u32 8, %s18
          %s125 = ssub.s32 2048, 2048
          %126 = vsyncadd %s119, %s125
          %s127 = smul.addr %s123, 2
          %s128 = smul.addr %s127, 128
          %s129 = scalar_lea.hbm %s0, %s128
          %s130 = sshll.u32 %s122, 4
          %s131 = int_to_ptr.vmem [resolvable:$true] %s130
          %136 = dma.hbm_to_vmem [thread:$0]  %s129, 2048, %s131, %s119, 256, 256, 16
        $region20: #{tpu_custom_call.1} parent=15 // pred_fallthru
          _
      $region16: #{tpu_custom_call.1} parent=5 // pred_fallthru
        _
      %p137 = scmp.le.s32.totalorder 1, %s18
      %p138 = scmp.lt.s32.totalorder %s18, 3
      %p139 = pnand %p137, %p138
      %p140 = pneg %p139
      // Predicated region
      $region21: #{tpu_custom_call.1} parent=5 // pred_check
        _
      $region22: #{tpu_custom_call.1} parent=5 // pred_check_branch
        %142 = sbr.rel (%p139) target = $region24
      $region23: #{tpu_custom_call.1} parent=5 // pred_region
        %s143 = ssub.s32 %s18, 1
        %s144 = sand.u32 %s31, 1
        %s145 = scalar_lea.sflag [#allocation3], %s144
        %s146 = sand.u32 %s31, 1
        %s147 = smul.addr %s146, 128
        %s148 = scalar_lea.vmem [#allocation2], %s147
        // Predicated region
        $region25: #{tpu_custom_call.1} parent=23 // pred_check
          %p149 = pneg %p44
        $region26: #{tpu_custom_call.1} parent=23 // pred_check_branch
          %151 = sbr.rel (%p149) target = $region28
        $region27: #{tpu_custom_call.1} parent=23 // pred_region
          %152 = dma.done %s145, 2048
        $region28: #{tpu_custom_call.1} parent=23 // pred_fallthru
          _
        %s153 = sand.u32 %s31, 1
        %s154 = scalar_lea.sflag [#allocation3], %s153
        %s155 = sand.u32 %s31, 1
        %s156 = smul.addr %s155, 128
        %s157 = scalar_lea.vmem [#allocation2], %s156
        %p158 = pneg %p44
        %p159 = pneg %p41
        %p160 = pneg %p70
        %p161 = pneg %p67
        %s162 = sand.u32 %s57, 1
        %s163 = scalar_lea.sflag [#allocation4], %s162
        %s164 = sand.u32 %s57, 1
        %s165 = smul.addr %s164, 64
        %s166 = scalar_lea.vmem [#allocation5], %s165
        %p167 = pneg %p96
        %p168 = pneg %p93
        %s169 = sand.u32 %s83, 1
        %s170 = scalar_lea.sflag [#allocation7], %s169
        %s171 = sand.u32 %s83, 1
        %s172 = smul.addr %s171, 64
        %s173 = scalar_lea.vmem [#allocation6], %s172
        %s174 = smul.u32 8, %s23
        %s175 = smul.u32 8, %s23
        %s176 = smul.u32 8, %s23
        %v177 = vld [vmem:[%s148] sm:$0xff]
        %v178 = vld [vmem:[%s148 + $0x10] sm:$0xff]
        %v179 = vld [vmem:[%s148 + $0x20] sm:$0xff]
        %v180 = vld [vmem:[%s148 + $0x30] sm:$0xff]
        %v181 = vld [vmem:[%s148 + $0x40] sm:$0xff]
        %v182 = vld [vmem:[%s148 + $0x50] sm:$0xff]
        %v183 = vld [vmem:[%s148 + $0x60] sm:$0xff]
        %v184 = vld [vmem:[%s148 + $0x70] sm:$0xff]
        %185 = vst [vmem:[%s166] sm:$0xff] %v177
        %186 = vst [vmem:[%s166 + $0x8] sm:$0xff] %v178
        %187 = vst [vmem:[%s166 + $0x10] sm:$0xff] %v179
        %188 = vst [vmem:[%s166 + $0x18] sm:$0xff] %v180
        %189 = vst [vmem:[%s166 + $0x20] sm:$0xff] %v181
        %190 = vst [vmem:[%s166 + $0x28] sm:$0xff] %v182
        %191 = vst [vmem:[%s166 + $0x30] sm:$0xff] %v183
        %192 = vst [vmem:[%s166 + $0x38] sm:$0xff] %v184
        %v193 = vld [vmem:[%s148 + $0x8] sm:$0xff]
        %v194 = vld [vmem:[%s148 + $0x18] sm:$0xff]
        %v195 = vld [vmem:[%s148 + $0x28] sm:$0xff]
        %v196 = vld [vmem:[%s148 + $0x38] sm:$0xff]
        %v197 = vld [vmem:[%s148 + $0x48] sm:$0xff]
        %v198 = vld [vmem:[%s148 + $0x58] sm:$0xff]
        %v199 = vld [vmem:[%s148 + $0x68] sm:$0xff]
        %v200 = vld [vmem:[%s148 + $0x78] sm:$0xff]
        %201 = vst [vmem:[%s173] sm:$0xff] %v193
        %202 = vst [vmem:[%s173 + $0x8] sm:$0xff] %v194
        %203 = vst [vmem:[%s173 + $0x10] sm:$0xff] %v195
        %204 = vst [vmem:[%s173 + $0x18] sm:$0xff] %v196
        %205 = vst [vmem:[%s173 + $0x20] sm:$0xff] %v197
        %206 = vst [vmem:[%s173 + $0x28] sm:$0xff] %v198
        %207 = vst [vmem:[%s173 + $0x30] sm:$0xff] %v199
        %208 = vst [vmem:[%s173 + $0x38] sm:$0xff] %v200
        %s209 = sand.u32 %s57, 1
        %s210 = scalar_lea.sflag [#allocation4], %s209
        %s211 = sand.u32 %s57, 1
        %s212 = smul.addr %s211, 64
        %s213 = scalar_lea.vmem [#allocation5], %s212
        %s214 = sand.u32 %s83, 1
        %s215 = scalar_lea.sflag [#allocation7], %s214
        %s216 = sand.u32 %s83, 1
        %s217 = smul.addr %s216, 64
        %s218 = scalar_lea.vmem [#allocation6], %s217
        // Predicated region
        $region29: #{tpu_custom_call.1} parent=23 // pred_check
          %p219 = pneg %p67
        $region30: #{tpu_custom_call.1} parent=23 // pred_check_branch
          %221 = sbr.rel (%p219) target = $region32
        $region31: #{tpu_custom_call.1} parent=23 // pred_region
          %s222 = smul.u32 8, %s23
          %s224 = ssub.s32 1024, 1024
          %225 = vsyncadd %s210, %s224
          %s226 = smul.addr %s222, 128
          %s227 = scalar_lea.hbm %s1, %s226
          %s228 = sshll.u32 %s213, 4
          %s229 = int_to_ptr.vmem [resolvable:$true] %s228
          %234 = dma.vmem_to_hbm [thread:$0]  %s229, 1024, %s227, %s210, 128, 128, 8
        $region32: #{tpu_custom_call.1} parent=23 // pred_fallthru
          _
        // Predicated region
        $region33: #{tpu_custom_call.1} parent=23 // pred_check
          %p235 = pneg %p93
        $region34: #{tpu_custom_call.1} parent=23 // pred_check_branch
          %237 = sbr.rel (%p235) target = $region36
        $region35: #{tpu_custom_call.1} parent=23 // pred_region
          %s238 = smul.u32 8, %s23
          %s240 = ssub.s32 1024, 1024
          %241 = vsyncadd %s215, %s240
          %s242 = smul.addr %s238, 128
          %s243 = scalar_lea.hbm %s2, %s242
          %s244 = sshll.u32 %s218, 4
          %s245 = int_to_ptr.vmem [resolvable:$true] %s244
          %250 = dma.vmem_to_hbm [thread:$0]  %s245, 1024, %s243, %s215, 128, 128, 8
        $region36: #{tpu_custom_call.1} parent=23 // pred_fallthru
          _
      $region24: #{tpu_custom_call.1} parent=5 // pred_fallthru
        _
      %p251 = scmp.le.s32.totalorder 2, %s18
      // Predicated region
      $region37: #{tpu_custom_call.1} parent=5 // pred_check
        %p252 = pneg %p251
      $region38: #{tpu_custom_call.1} parent=5 // pred_check_branch
        %254 = sbr.rel (%p252) target = $region40
      $region39: #{tpu_custom_call.1} parent=5 // pred_region
        %s255 = ssub.s32 %s18, 2
        // Predicated region
        $region41: #{tpu_custom_call.1} parent=39 // pred_check
          %p256 = pneg %p73
        $region42: #{tpu_custom_call.1} parent=39 // pred_check_branch
          %258 = sbr.rel (%p256) target = $region44
        $region43: #{tpu_custom_call.1} parent=39 // pred_region
          %s259 = sand.u32 %s58, 1
          %s260 = scalar_lea.sflag [#allocation4], %s259
          %s261 = sand.u32 %s58, 1
          %s262 = smul.addr %s261, 64
          %s263 = scalar_lea.vmem [#allocation5], %s262
          %264 = dma.done %s260, 1024
        $region44: #{tpu_custom_call.1} parent=39 // pred_fallthru
          _
        // Predicated region
        $region45: #{tpu_custom_call.1} parent=39 // pred_check
          %p265 = pneg %p99
        $region46: #{tpu_custom_call.1} parent=39 // pred_check_branch
          %267 = sbr.rel (%p265) target = $region48
        $region47: #{tpu_custom_call.1} parent=39 // pred_region
          %s268 = sand.u32 %s84, 1
          %s269 = scalar_lea.sflag [#allocation7], %s268
          %s270 = sand.u32 %s84, 1
          %s271 = smul.addr %s270, 64
          %s272 = scalar_lea.vmem [#allocation6], %s271
          %273 = dma.done %s269, 1024
        $region48: #{tpu_custom_call.1} parent=39 // pred_fallthru
          _
      $region40: #{tpu_custom_call.1} parent=5 // pred_fallthru
        _
    $region6: #{tpu_custom_call.1} parent=1 // loop_footer
      %s22 = sadd.s32 1, %s18
    $region7: #{tpu_custom_call.1} parent=1 // loop_footer_branch
      %17 = sbr.rel target = $region3
    $region8: #{tpu_custom_call.1} parent=1 // loop_exit
      _
    %274 = vsyncpa [#allocation3], 1
    %s275 = scalar_lea.sflag [#allocation3], 1
    %276 = vsyncpa %s275, 1
    %277 = vsyncpa [#allocation4], 1
    %s278 = scalar_lea.sflag [#allocation4], 1
    %279 = vsyncpa %s278, 1
    %280 = vsyncpa [#allocation7], 1
    %s281 = scalar_lea.sflag [#allocation7], 1
    %282 = vsyncpa %s281, 1

</llo_original>
